<compile_context>
chip_gen: v6e
topology: v6e:2x2x1
jax: 0.10.0
libtpu: 0.0.40
codegen_flags: <defaults>
</compile_context>

<pallas_src>
import functools

import jax
import jax.numpy as jnp
import numpy as np
from jax.experimental import pallas as pl
from jax.experimental.pallas import tpu as pltpu


def nonlocal_attention_kernel(x_ref, phi_ref, g_ref, wth_ref, wog_ref, out_ref,
                              og_s, *, C, HWq, HWqp, TQ):
    qt = pl.program_id(1)

    # Once per batch: fold gamma * W_o into the pooled g (one small matmul) and append
    # an 8-row block of ones so the PV matmul also produces the softmax denominator as a
    # lane-dense (1, TQ) row (no sublane->lane relayout needed later).
    @pl.when(qt == 0)
    def _():
        og = jnp.dot(wog_ref[...], g_ref[...],
                     preferred_element_type=jnp.float32)              # (C, HWqp)
        og_s[0:C, :] = og.astype(og_s.dtype)
        og_s[C:C + 8, :] = jnp.ones((8, HWqp), og_s.dtype)

    # Per query tile: everything lane-dense along the position axis.
    q0 = pl.multiple_of(qt * TQ, TQ)
    x_tile = x_ref[:, pl.ds(q0, TQ)]                                  # (C, TQ) f32

    # theta projection of this tile (K = C, tiny), then bf16 for the score matmul.
    theta = jnp.dot(wth_ref[...], x_tile,
                    preferred_element_type=jnp.float32)               # (C8p, TQ) f32

    # scores: s[p, q] = sum_c theta[c, p] * phi[c, q]   (bf16 MXU operands, f32 acc)
    s = jax.lax.dot_general(theta.astype(jnp.bfloat16), phi_ref[...],
                            (((0,), (0,)), ((), ())),
                            preferred_element_type=jnp.float32)       # (TQ, HWqp)
    if HWqp != HWq:  # mask the lane-padded (invalid) key positions
        kidx = jax.lax.broadcasted_iota(jnp.int32, (TQ, HWqp), 1)
        s = jnp.where(kidx < HWq, s, -1e30)

    # softmax numerator (elementwise math in f32)
    s_max = jnp.max(s, axis=-1, keepdims=True)
    e = jnp.exp(s - s_max)                                            # (TQ, HWqp) f32

    # PV matmul with unnormalized weights; the appended ones-rows yield the denominator.
    o_aug = jax.lax.dot_general(og_s[...], e.astype(jnp.bfloat16),
                                (((1,), (1,)), ((), ())),
                                preferred_element_type=jnp.float32)   # (C+8, TQ)
    inv = pl.reciprocal(o_aug[C:C + 1, :], approx=True)               # (1, TQ)
    out_ref[...] = (o_aug[0:C, :] * inv + x_tile).astype(out_ref.dtype)


def _round_up(v, m):
    return ((v + m - 1) // m) * m


def _pick_tq(HW):
    for cand in (256, 512, 128):
        if HW % cand == 0:
            return cand
    return HW


def nonlocal_attention(x, w_theta, w_phi, w_g, w_o, gamma):
    B, C, H, W = x.shape
    assert H % 2 == 0 and W % 2 == 0
    HW = H * W
    Hh, Wh = H // 2, W // 2
    HWq = Hh * Wh
    C8, Ch = C // 8, C // 2
    C8p = _round_up(max(C8, 8), 8)
    Chp = _round_up(max(Ch, 8), 8)
    HWqp = _round_up(max(HWq, 128), 128)
    TQ = _pick_tq(HW)
    QT = HW // TQ

    x2 = x.reshape(B, C, HW)  # free reshape, natural position order

    # phi/g 1x1 conv + 2x2 maxpool prologue (tiny, runs as XLA in the wrapper).
    def proj_pool(w):
        t = jnp.einsum('oc,bchw->bohw', w, x)
        t = t.reshape(B, -1, Hh, 2, Wh, 2).max(axis=(3, 5))
        return t.reshape(B, -1, HWq)

    phi_p = proj_pool(w_phi)                                          # (B, C8, HWq)
    g_p = proj_pool(w_g)                                              # (B, Ch, HWq)

    # pad channels to sublane multiples and keys to lane multiples (zeros; masked in-kernel)
    phi_p = jnp.pad(phi_p, ((0, 0), (0, C8p - C8), (0, HWqp - HWq))).astype(jnp.bfloat16)
    g_p = jnp.pad(g_p, ((0, 0), (0, Chp - Ch), (0, HWqp - HWq))).astype(jnp.float32)

    wth_p = jnp.pad(w_theta.astype(jnp.float32), ((0, C8p - C8), (0, 0)))     # (C8p, C)
    w_og = jnp.float32(gamma) * jnp.pad(w_o.astype(jnp.float32),
                                        ((0, 0), (0, Chp - Ch)))              # (C, Chp)

    kernel = functools.partial(nonlocal_attention_kernel,
                               C=C, HWq=HWq, HWqp=HWqp, TQ=TQ)

    out2 = pl.pallas_call(
        kernel,
        out_shape=jax.ShapeDtypeStruct((B, C, HW), x.dtype),
        grid=(B, QT),
        in_specs=[
            pl.BlockSpec((None, C, HW), lambda b, qt: (b, 0, 0)),      # image (once / batch)
            pl.BlockSpec((None, C8p, HWqp), lambda b, qt: (b, 0, 0)),  # pooled phi (bf16)
            pl.BlockSpec((None, Chp, HWqp), lambda b, qt: (b, 0, 0)),  # pooled g (f32)
            pl.BlockSpec((C8p, C), lambda b, qt: (0, 0)),              # theta weight
            pl.BlockSpec((C, Chp), lambda b, qt: (0, 0)),              # gamma * W_o
        ],
        out_specs=pl.BlockSpec((None, C, TQ), lambda b, qt: (b, 0, qt)),
        scratch_shapes=[pltpu.VMEM((C + 8, HWqp), jnp.bfloat16)],      # folded og + ones row
        compiler_params=pltpu.CompilerParams(
            dimension_semantics=("parallel", "arbitrary"),
            vmem_limit_bytes=64 * 1024 * 1024),
    )(x2, phi_p, g_p, wth_p, w_og)

    return out2.reshape(B, C, H, W)


def reference(x, w_theta, w_phi, w_g, w_o, gamma):
    """Pure-JAX replica of the PyTorch forward (NCHW)."""
    B, C, H, W = x.shape
    C8, Ch = C // 8, C // 2

    def conv1x1(w, t):
        return jnp.einsum('oc,bchw->bohw', w, t)

    def maxpool2(t):
        b, c, h, w = t.shape
        return jnp.max(t.reshape(b, c, h // 2, 2, w // 2, 2), axis=(3, 5))

    theta = conv1x1(w_theta, x).reshape(B, C8, H * W)
    phi = maxpool2(conv1x1(w_phi, x)).reshape(B, C8, H * W // 4)
    g = maxpool2(conv1x1(w_g, x)).reshape(B, Ch, H * W // 4)
    s = jnp.einsum('bcp,bcq->bpq', theta, phi)
    beta = jax.nn.softmax(s, axis=-1)
    o = jnp.einsum('bcq,bpq->bcp', g, beta).reshape(B, Ch, H, W)
    o = conv1x1(w_o, o)
    return gamma * o + x


if __name__ == "__main__":
    B, C, H, W = 2, 16, 16, 16            # ch_in=16 -> ch_attn=2, ch_in//2=8
    key = jax.random.PRNGKey(0)
    kx, kt, kp, kg, ko = jax.random.split(key, 5)

    x = jax.random.normal(kx, (B, C, H, W), jnp.float32)
    # deterministic parameter init (shapes from __init__); spectral_norm just rescales
    # the weight, so the effective weights are used directly.
    w_theta = 0.1 * jax.random.normal(kt, (C // 8, C), jnp.float32)
    w_phi = 0.1 * jax.random.normal(kp, (C // 8, C), jnp.float32)
    w_g = 0.1 * jax.random.normal(kg, (C // 2, C), jnp.float32)
    w_o = 0.1 * jax.random.normal(ko, (C, C // 2), jnp.float32)
    gamma = 0.5                            # module inits gamma=0.0; nonzero to exercise the path

    out = nonlocal_attention(x, w_theta, w_phi, w_g, w_o, gamma)
    out = jax.block_until_ready(out)

    ref = jax.block_until_ready(reference(x, w_theta, w_phi, w_g, w_o, gamma))
    np.testing.assert_allclose(np.asarray(out), np.asarray(ref),
                               rtol=1e-2, atol=1e-2)
    print("KERNEL_OK")
</pallas_src>

<mosaic_0001>
module attributes {stable_mosaic.version = 11 : i64} {
  func.func @nonlocal_attention_kernel(%arg0: i32, %arg1: i32, %arg2: memref<1x16x256xf32, #tpu.memory_space<vmem>>, %arg3: memref<1x8x128xbf16, #tpu.memory_space<vmem>>, %arg4: memref<1x8x128xf32, #tpu.memory_space<vmem>>, %arg5: memref<8x16xf32, #tpu.memory_space<vmem>>, %arg6: memref<16x8xf32, #tpu.memory_space<vmem>>, %arg7: memref<1x16x256xf32, #tpu.memory_space<vmem>>, %arg8: memref<24x128xbf16, #tpu.memory_space<vmem>>) attributes {dimension_semantics = [#tpu.dimension_semantics<parallel>, #tpu.dimension_semantics<arbitrary>], iteration_bounds = array<i64: 2, 1>, scalar_prefetch = 0 : i64, scratch_operands = 1 : i64, tpu.core_type = #tpu.core_type<tc>, window_params = [{transform_indices = @transform_0, window_bounds = array<i64: 1, 16, 256>}, {transform_indices = @transform_1, window_bounds = array<i64: 1, 8, 128>}, {transform_indices = @transform_2, window_bounds = array<i64: 1, 8, 128>}, {pipeline_mode = #tpu.pipeline_mode<synchronous>, transform_indices = @transform_3, window_bounds = array<i64: 8, 16>}, {pipeline_mode = #tpu.pipeline_mode<synchronous>, transform_indices = @transform_4, window_bounds = array<i64: 16, 8>}, {transform_indices = @transform_5, window_bounds = array<i64: 1, 16, 256>}]} {
    %c0_i32 = arith.constant 0 : i32
    %0 = arith.cmpi eq, %arg1, %c0_i32 : i32
    %1 = arith.extui %0 : i1 to i32
    %c0_i32_0 = arith.constant 0 : i32
    %2 = arith.cmpi ne, %1, %c0_i32_0 : i32
    scf.if %2 {
      %c0_16 = arith.constant 0 : index
      %c0_17 = arith.constant 0 : index
      %36 = vector.load %arg6[%c0_16, %c0_17] : memref<16x8xf32, #tpu.memory_space<vmem>>, vector<16x8xf32>
      %c0_18 = arith.constant 0 : index
      %c0_19 = arith.constant 0 : index
      %c0_20 = arith.constant 0 : index
      %37 = vector.load %arg4[%c0_18, %c0_19, %c0_20] : memref<1x8x128xf32, #tpu.memory_space<vmem>>, vector<1x8x128xf32>
      %38 = vector.shape_cast %37 : vector<1x8x128xf32> to vector<8x128xf32>
      %cst_21 = arith.constant dense<0.000000e+00> : vector<16x128xf32>
      %39 = tpu.matmul %36, %38, %cst_21 {dimension_numbers = #tpu.dot_dimension_numbers<[1], [0], [0], [1], [0, 0, 1, 1], [], []>} : vector<16x8xf32>, vector<8x128xf32>, vector<16x128xf32> -> vector<16x128xf32>
      %40 = arith.truncf %39 : vector<16x128xf32> to vector<16x128xbf16>
      %c0_22 = arith.constant 0 : index
      %c0_23 = arith.constant 0 : index
      %41 = vector.load %arg8[%c0_22, %c0_23] : memref<24x128xbf16, #tpu.memory_space<vmem>>, vector<16x128xbf16>
      tpu.vector_store %arg8[%c0_22, %c0_23], %40 {strides = array<i32>} : memref<24x128xbf16, #tpu.memory_space<vmem>>, vector<16x128xbf16>,
      %cst_24 = arith.constant 1.000000e+00 : bf16
      %42 = vector.broadcast %cst_24 : bf16 to vector<8x128xbf16>
      %c16 = arith.constant 16 : index
      %c0_25 = arith.constant 0 : index
      %43 = vector.load %arg8[%c16, %c0_25] : memref<24x128xbf16, #tpu.memory_space<vmem>>, vector<8x128xbf16>
      tpu.vector_store %arg8[%c16, %c0_25], %42 {strides = array<i32>} : memref<24x128xbf16, #tpu.memory_space<vmem>>, vector<8x128xbf16>,
    } else {
    }
    %c256_i32 = arith.constant 256 : i32
    %3 = arith.muli %arg1, %c256_i32 : i32
    %4 = tpu.assume_multiple %3, 256 : i32
    %c0 = arith.constant 0 : index
    %c0_1 = arith.constant 0 : index
    %5 = arith.index_cast %4 : i32 to index
    %6 = vector.load %arg2[%c0, %c0_1, %5] : memref<1x16x256xf32, #tpu.memory_space<vmem>>, vector<1x16x256xf32>
    %7 = vector.shape_cast %6 : vector<1x16x256xf32> to vector<16x256xf32>
    %c0_2 = arith.constant 0 : index
    %c0_3 = arith.constant 0 : index
    %8 = vector.load %arg5[%c0_2, %c0_3] : memref<8x16xf32, #tpu.memory_space<vmem>>, vector<8x16xf32>
    %cst = arith.constant dense<0.000000e+00> : vector<8x256xf32>
    %9 = tpu.matmul %8, %7, %cst {dimension_numbers = #tpu.dot_dimension_numbers<[1], [0], [0], [1], [0, 0, 1, 1], [], []>} : vector<8x16xf32>, vector<16x256xf32>, vector<8x256xf32> -> vector<8x256xf32>
    %10 = arith.truncf %9 : vector<8x256xf32> to vector<8x256xbf16>
    %c0_4 = arith.constant 0 : index
    %c0_5 = arith.constant 0 : index
    %c0_6 = arith.constant 0 : index
    %11 = vector.load %arg3[%c0_4, %c0_5, %c0_6] : memref<1x8x128xbf16, #tpu.memory_space<vmem>>, vector<1x8x128xbf16>
    %12 = vector.shape_cast %11 : vector<1x8x128xbf16> to vector<8x128xbf16>
    %cst_7 = arith.constant dense<0.000000e+00> : vector<256x128xf32>
    %13 = tpu.matmul %10, %12, %cst_7 {dimension_numbers = #tpu.dot_dimension_numbers<[0], [0], [1], [1], [0, 1, 1, 1], [], []>} : vector<8x256xbf16>, vector<8x128xbf16>, vector<256x128xf32> -> vector<256x128xf32>
    %14 = tpu.iota {dimensions = array<i32: 1>} : vector<256x128xi32>
    %c64_i32 = arith.constant 64 : i32
    %15 = vector.broadcast %c64_i32 : i32 to vector<256x128xi32>
    %16 = arith.cmpi slt, %14, %15 : vector<256x128xi32>
    %cst_8 = arith.constant -1.000000e+30 : f32
    %17 = vector.broadcast %cst_8 : f32 to vector<256x128xf32>
    %18 = arith.select %16, %13, %17 : vector<256x128xi1>, vector<256x128xf32>
    %cst_9 = arith.constant dense<0xFF800000> : vector<256xf32>
    %19 = vector.multi_reduction <maximumf>, %18, %cst_9 [1] : vector<256x128xf32> to vector<256xf32>
    %20 = vector.shape_cast %19 : vector<256xf32> to vector<256x1xf32>
    %21 = vector.broadcast %20 : vector<256x1xf32> to vector<256x128xf32>
    %22 = arith.subf %18, %21 : vector<256x128xf32>
    %23 = math.exp %22 : vector<256x128xf32>
    %c0_10 = arith.constant 0 : index
    %c0_11 = arith.constant 0 : index
    %24 = vector.load %arg8[%c0_10, %c0_11] : memref<24x128xbf16, #tpu.memory_space<vmem>>, vector<24x128xbf16>
    %25 = arith.truncf %23 : vector<256x128xf32> to vector<256x128xbf16>
    %cst_12 = arith.constant dense<0.000000e+00> : vector<24x256xf32>
    %26 = tpu.matmul %24, %25, %cst_12 {dimension_numbers = #tpu.dot_dimension_numbers<[1], [1], [0], [0], [0, 0, 1, 0], [], []>} : vector<24x128xbf16>, vector<256x128xbf16>, vector<24x256xf32> -> vector<24x256xf32>
    %27 = vector.extract_strided_slice %26 {offsets = [16, 0], sizes = [1, 256], strides = [1, 1]} : vector<24x256xf32> to vector<1x256xf32>
    %28 = tpu.reciprocal %27 {approx = true} : vector<1x256xf32> -> vector<1x256xf32>
    %29 = vector.extract_strided_slice %26 {offsets = [0, 0], sizes = [16, 256], strides = [1, 1]} : vector<24x256xf32> to vector<16x256xf32>
    %30 = vector.broadcast %28 : vector<1x256xf32> to vector<16x256xf32>
    %31 = arith.mulf %29, %30 : vector<16x256xf32>
    %32 = arith.addf %31, %7 : vector<16x256xf32>
    %c0_13 = arith.constant 0 : index
    %c0_14 = arith.constant 0 : index
    %c0_15 = arith.constant 0 : index
    %33 = vector.load %arg7[%c0_13, %c0_14, %c0_15] : memref<1x16x256xf32, #tpu.memory_space<vmem>>, vector<1x16x256xf32>
    %34 = vector.shape_cast %33 : vector<1x16x256xf32> to vector<16x256xf32>
    %35 = vector.shape_cast %32 : vector<16x256xf32> to vector<1x16x256xf32>
    tpu.vector_store %arg7[%c0_13, %c0_14, %c0_15], %35 {strides = array<i32>} : memref<1x16x256xf32, #tpu.memory_space<vmem>>, vector<1x16x256xf32>,
    return
  }
  func.func @transform_0(%arg0: i32, %arg1: i32) -> (i32, i32, i32) {
    %c0_i32 = arith.constant 0 : i32
    %c0_i32_0 = arith.constant 0 : i32
    %c0_i32_1 = arith.constant 0 : i32
    return %arg0, %c0_i32, %c0_i32_0 : i32, i32, i32
  }
  func.func @transform_1(%arg0: i32, %arg1: i32) -> (i32, i32, i32) {
    %c0_i32 = arith.constant 0 : i32
    %c0_i32_0 = arith.constant 0 : i32
    %c0_i32_1 = arith.constant 0 : i32
    return %arg0, %c0_i32, %c0_i32_0 : i32, i32, i32
  }
  func.func @transform_2(%arg0: i32, %arg1: i32) -> (i32, i32, i32) {
    %c0_i32 = arith.constant 0 : i32
    %c0_i32_0 = arith.constant 0 : i32
    %c0_i32_1 = arith.constant 0 : i32
    return %arg0, %c0_i32, %c0_i32_0 : i32, i32, i32
  }
  func.func @transform_3(%arg0: i32, %arg1: i32) -> (i32, i32) {
    %c0_i32 = arith.constant 0 : i32
    %c0_i32_0 = arith.constant 0 : i32
    %c0_i32_1 = arith.constant 0 : i32
    return %c0_i32, %c0_i32_0 : i32, i32
  }
  func.func @transform_4(%arg0: i32, %arg1: i32) -> (i32, i32) {
    %c0_i32 = arith.constant 0 : i32
    %c0_i32_0 = arith.constant 0 : i32
    %c0_i32_1 = arith.constant 0 : i32
    return %c0_i32, %c0_i32_0 : i32, i32
  }
  func.func @transform_5(%arg0: i32, %arg1: i32) -> (i32, i32, i32) {
    %c0_i32 = arith.constant 0 : i32
    %c0_i32_0 = arith.constant 0 : i32
    return %arg0, %c0_i32, %arg1 : i32, i32, i32
  }
}

</mosaic_0001>

<llo_original>
// kernel: tpu_custom_call.1
$region0: #{tpu_custom_call.1}
  #allocation0 [shape = 'u32[]', space=smem, size = 0x4, offset = 0x4, fixed_abs, tag = 'smem constant byte address 0x4 - core index']
  #allocation1 [shape = 'u32[144,128]{1,0:T(1,128)}', space=vmem, size = 0x12000, scoped, tag = 'internal scratch']
  #allocation2 [shape = 'bf16[24,128]{1,0:T(8,128)(2,1)}', space=vmem, size = 0x1800, scoped, tag = 'scratch operand']
  %s0 = inlined_call_operand.hbm [shape: f32[2,16,256], index: 0, kind: input, shape index: {}]
  %s1 = inlined_call_operand.vmem [shape: bf16[2,8,128], index: 1, kind: input, shape index: {}]
  %s2 = inlined_call_operand.vmem [shape: f32[2,8,128], index: 2, kind: input, shape index: {}]
  %s3 = inlined_call_operand.hbm [shape: f32[8,16], index: 3, kind: input, shape index: {}]
  %s4 = inlined_call_operand.vmem [shape: f32[16,8], index: 4, kind: input, shape index: {}]
  %s5 = inlined_call_operand.hbm [shape: f32[2,16,256], index: 5, kind: output, shape index: {}]
  %s6 = sld [smem:[#allocation0]]
  $region65: #{tpu_custom_call.1} parent=0
    _
  %s8 = ssub.s32 1, %s6
  %s9 = scalar_select 0, %s8, %s6
  $region1: #{tpu_custom_call.1} parent=0
    #allocation3 [shape = 'u8[32768]{0}', space=vmem, size = 0x8000, scoped, tag = 'input window, operand 0']
    #allocation4 [shape = 's32[2]{0}', space=sflag, size = 0x8, scoped, tag = 'scoped memory for tpu_custom_call.1']
    #allocation5 [shape = 's32[2]{0}', space=sflag, size = 0x8, scoped, tag = 'scoped memory for tpu_custom_call.1']
    #allocation6 [shape = 'u8[4096]{0}', space=vmem, size = 0x1000, scoped, tag = 'input window, operand 3, single buffered']
    #allocation7 [shape = 's32[1]{0}', space=sflag, size = 0x4, scoped, tag = 'scoped memory for tpu_custom_call.1']
    #allocation8 [shape = 'u8[32768]{0}', space=vmem, size = 0x8000, scoped, tag = 'output window, operand 0']
    %10 = vsyncpa [#allocation4], 0
    %s11 = scalar_lea.sflag [#allocation4], 1
    %12 = vsyncpa %s11, 0
    %13 = vsyncpa [#allocation7], 0
    %14 = vsyncpa [#allocation5], 0
    %s15 = scalar_lea.sflag [#allocation5], 1
    %16 = vsyncpa %s15, 0
    loop: start=0, step=1, limit=4
    $region2: #{tpu_custom_call.1} parent=1 // loop_pre_header
      _
    $region3: #{tpu_custom_call.1} parent=1 // loop_header
      %s18 = sphi 0, %s22
      %p19 = scmp.ge.s32.totalorder %s18, 4
      %s25 = sphi 0, %s37
      %s26 = sphi 0, %s33
      %s27 = sphi 0, %s25
      %s28 = sphi 0, %s26
      %s29 = sphi 0, %s27
      %s30 = sphi 0, %s28
      %s40 = sphi 0, %s42
      %s43 = sphi 0, %s40
      %s44 = sphi 0, %s43
      %s60 = sphi 0, %s44
      %s66 = sphi 0, %s68
      %s69 = sphi 0, %s66
      %s70 = sphi 0, %s69
      %s86 = sphi 0, %s70
      %s92 = sphi 0, %s94
      %s95 = sphi 0, %s92
      %s96 = sphi 0, %s95
      %s112 = sphi 0, %s96
      %s116 = sphi 0, %s116
      %s118 = sphi 0, %s116
      %s119 = sphi 0, %s118
      %s133 = sphi 0, %s119
      %s137 = sphi 0, %s137
      %s139 = sphi 0, %s137
      %s140 = sphi 0, %s139
      %s154 = sphi 0, %s140
      %s162 = sphi 0, %s164
      %s165 = sphi 0, %s162
      %s166 = sphi 0, %s165
      %s182 = sphi 0, %s166
    $region4: #{tpu_custom_call.1} parent=1 // loop_header_branch
      %21 = sbr.rel (%p19) target = $region8
    $region5: #{tpu_custom_call.1} parent=1 // loop_body
      %s23 = ssub.s32 %s18, 1
      %s24 = ssub.s32 %s18, 2
      %s31 = sadd.s32 1, %s26
      %p32 = scmp.ge.s32.totalorder %s31, 1
      %s33 = scalar_select %p32, 0, %s31
      %s34 = sadd.s32 1, %s25
      %s35 = scalar_select %p32, %s34, %s25
      %p36 = scmp.ge.s32.totalorder %s35, 2
      %s37 = scalar_select %p36, 0, %s35
      %s38 = ssub.s32 %s25, %s37
      %p39 = scmp.eq.s32.totalorder %s38, 0
      %s41 = sadd.s32 %s40, 1
      %s42 = scalar_select %p39, %s40, %s41
      %p45 = pneg %p39
      %p46 = scmp.eq.s32.totalorder %s18, 1
      %p47 = por %p45, %p46
      %p48 = scmp.ne.s32.totalorder %s40, %s43
      %p49 = scmp.eq.s32.totalorder %s18, 0
      %p50 = por %p48, %p49
      %p51 = scmp.ne.s32.totalorder %s40, %s43
      %p52 = scmp.eq.s32.totalorder %s23, 1
      %p53 = por %p51, %p52
      %p54 = scmp.ne.s32.totalorder %s43, %s44
      %p55 = scmp.eq.s32.totalorder %s23, 0
      %p56 = por %p54, %p55
      %p57 = scmp.ne.s32.totalorder %s43, %s44
      %p58 = scmp.eq.s32.totalorder %s24, 1
      %p59 = por %p57, %p58
      %p61 = scmp.ne.s32.totalorder %s44, %s60
      %p62 = scmp.eq.s32.totalorder %s24, 0
      %p63 = por %p61, %p62
      %s64 = ssub.s32 %s25, %s37
      %p65 = scmp.eq.s32.totalorder %s64, 0
      %s67 = sadd.s32 %s66, 1
      %s68 = scalar_select %p65, %s66, %s67
      %p71 = pneg %p65
      %p72 = scmp.eq.s32.totalorder %s18, 1
      %p73 = por %p71, %p72
      %p74 = scmp.ne.s32.totalorder %s66, %s69
      %p75 = scmp.eq.s32.totalorder %s18, 0
      %p76 = por %p74, %p75
      %p77 = scmp.ne.s32.totalorder %s66, %s69
      %p78 = scmp.eq.s32.totalorder %s23, 1
      %p79 = por %p77, %p78
      %p80 = scmp.ne.s32.totalorder %s69, %s70
      %p81 = scmp.eq.s32.totalorder %s23, 0
      %p82 = por %p80, %p81
      %p83 = scmp.ne.s32.totalorder %s69, %s70
      %p84 = scmp.eq.s32.totalorder %s24, 1
      %p85 = por %p83, %p84
      %p87 = scmp.ne.s32.totalorder %s70, %s86
      %p88 = scmp.eq.s32.totalorder %s24, 0
      %p89 = por %p87, %p88
      %s90 = ssub.s32 %s25, %s37
      %p91 = scmp.eq.s32.totalorder %s90, 0
      %s93 = sadd.s32 %s92, 1
      %s94 = scalar_select %p91, %s92, %s93
      %p97 = pneg %p91
      %p98 = scmp.eq.s32.totalorder %s18, 1
      %p99 = por %p97, %p98
      %p100 = scmp.ne.s32.totalorder %s92, %s95
      %p101 = scmp.eq.s32.totalorder %s18, 0
      %p102 = por %p100, %p101
      %p103 = scmp.ne.s32.totalorder %s92, %s95
      %p104 = scmp.eq.s32.totalorder %s23, 1
      %p105 = por %p103, %p104
      %p106 = scmp.ne.s32.totalorder %s95, %s96
      %p107 = scmp.eq.s32.totalorder %s23, 0
      %p108 = por %p106, %p107
      %p109 = scmp.ne.s32.totalorder %s95, %s96
      %p110 = scmp.eq.s32.totalorder %s24, 1
      %p111 = por %p109, %p110
      %p113 = scmp.ne.s32.totalorder %s96, %s112
      %p114 = scmp.eq.s32.totalorder %s24, 0
      %p115 = por %p113, %p114
      %s117 = sadd.s32 %s116, 1
      %p120 = scmp.eq.s32.totalorder %s18, 1
      %p121 = scmp.ne.s32.totalorder %s116, %s118
      %p122 = scmp.eq.s32.totalorder %s18, 0
      %p123 = por %p121, %p122
      %p124 = scmp.ne.s32.totalorder %s116, %s118
      %p125 = scmp.eq.s32.totalorder %s23, 1
      %p126 = por %p124, %p125
      %p127 = scmp.ne.s32.totalorder %s118, %s119
      %p128 = scmp.eq.s32.totalorder %s23, 0
      %p129 = por %p127, %p128
      %p130 = scmp.ne.s32.totalorder %s118, %s119
      %p131 = scmp.eq.s32.totalorder %s24, 1
      %p132 = por %p130, %p131
      %p134 = scmp.ne.s32.totalorder %s119, %s133
      %p135 = scmp.eq.s32.totalorder %s24, 0
      %p136 = por %p134, %p135
      %s138 = sadd.s32 %s137, 1
      %p141 = scmp.eq.s32.totalorder %s18, 1
      %p142 = scmp.ne.s32.totalorder %s137, %s139
      %p143 = scmp.eq.s32.totalorder %s18, 0
      %p144 = por %p142, %p143
      %p145 = scmp.ne.s32.totalorder %s137, %s139
      %p146 = scmp.eq.s32.totalorder %s23, 1
      %p147 = por %p145, %p146
      %p148 = scmp.ne.s32.totalorder %s139, %s140
      %p149 = scmp.eq.s32.totalorder %s23, 0
      %p150 = por %p148, %p149
      %p151 = scmp.ne.s32.totalorder %s139, %s140
      %p152 = scmp.eq.s32.totalorder %s24, 1
      %p153 = por %p151, %p152
      %p155 = scmp.ne.s32.totalorder %s140, %s154
      %p156 = scmp.eq.s32.totalorder %s24, 0
      %p157 = por %p155, %p156
      %s158 = ssub.s32 %s25, %s37
      %s159 = ssub.s32 %s26, %s33
      %s160 = sor.u32 %s158, %s159
      %p161 = scmp.eq.s32.totalorder %s160, 0
      %s163 = sadd.s32 %s162, 1
      %s164 = scalar_select %p161, %s162, %s163
      %p167 = pneg %p161
      %p168 = scmp.eq.s32.totalorder %s18, 1
      %p169 = por %p167, %p168
      %p170 = scmp.ne.s32.totalorder %s162, %s165
      %p171 = scmp.eq.s32.totalorder %s18, 0
      %p172 = por %p170, %p171
      %p173 = scmp.ne.s32.totalorder %s162, %s165
      %p174 = scmp.eq.s32.totalorder %s23, 1
      %p175 = por %p173, %p174
      %p176 = scmp.ne.s32.totalorder %s165, %s166
      %p177 = scmp.eq.s32.totalorder %s23, 0
      %p178 = por %p176, %p177
      %p179 = scmp.ne.s32.totalorder %s165, %s166
      %p180 = scmp.eq.s32.totalorder %s24, 1
      %p181 = por %p179, %p180
      %p183 = scmp.ne.s32.totalorder %s166, %s182
      %p184 = scmp.eq.s32.totalorder %s24, 0
      %p185 = por %p183, %p184
      %p186 = scmp.le.s32.totalorder 1, %s18
      %p187 = scmp.lt.s32.totalorder %s18, 3
      %p188 = pnand %p186, %p187
      %p189 = pneg %p188
      // Predicated region
      $region9: #{tpu_custom_call.1} parent=5 // pred_check
        _
      $region10: #{tpu_custom_call.1} parent=5 // pred_check_branch
        %191 = sbr.rel (%p188) target = $region12
      $region11: #{tpu_custom_call.1} parent=5 // pred_region
        %s192 = ssub.s32 %s18, 1
        // Predicated region
        $region13: #{tpu_custom_call.1} parent=11 // pred_check
          %p193 = pneg %p129
        $region14: #{tpu_custom_call.1} parent=11 // pred_check_branch
          %195 = sbr.rel (%p193) target = $region16
        $region15: #{tpu_custom_call.1} parent=11 // pred_region
          %s197 = ssub.s32 128, 128
          %198 = vsyncadd [#allocation7], %s197
          %s200 = sshll.u32 [#allocation6], 4
          %s201 = int_to_ptr.vmem [resolvable:$true] %s200
          %203 = dma.hbm_to_vmem [thread:$0]  %s3, 128, %s201, [#allocation7]
        $region16: #{tpu_custom_call.1} parent=11 // pred_fallthru
          _
        // Predicated region
        $region17: #{tpu_custom_call.1} parent=11 // pred_check
          %p204 = pneg %p150
        $region18: #{tpu_custom_call.1} parent=11 // pred_check_branch
          %206 = sbr.rel (%p204) target = $region20
        $region19: #{tpu_custom_call.1} parent=11 // pred_region
          _
        $region20: #{tpu_custom_call.1} parent=11 // pred_fallthru
          _
      $region12: #{tpu_custom_call.1} parent=5 // pred_fallthru
        _
      %p207 = scmp.lt.s32.totalorder %s18, 2
      // Predicated region
      $region21: #{tpu_custom_call.1} parent=5 // pred_check
        %p208 = pneg %p207
      $region22: #{tpu_custom_call.1} parent=5 // pred_check_branch
        %210 = sbr.rel (%p208) target = $region24
      $region23: #{tpu_custom_call.1} parent=5 // pred_region
        // Predicated region
        $region25: #{tpu_custom_call.1} parent=23 // pred_check
          %p211 = pneg %p50
        $region26: #{tpu_custom_call.1} parent=23 // pred_check_branch
          %213 = sbr.rel (%p211) target = $region28
        $region27: #{tpu_custom_call.1} parent=23 // pred_region
          %s214 = sand.u32 %s40, 1
          %s215 = scalar_lea.sflag [#allocation4], %s214
          %s216 = sand.u32 %s40, 1
          %s217 = smul.addr %s216, 32
          %s218 = scalar_lea.vmem [#allocation3], %s217
          %s220 = ssub.s32 512, 512
          %221 = vsyncadd %s215, %s220
          %s222 = smul.addr %s25, 4
          %s223 = smul.addr %s222, 128
          %s224 = scalar_lea.hbm %s0, %s223
          %s225 = sshll.u32 %s218, 4
          %s226 = int_to_ptr.vmem [resolvable:$true] %s225
          %231 = dma.hbm_to_vmem [thread:$0]  %s224, 512, %s226, %s215, 256, 256, 16
        $region28: #{tpu_custom_call.1} parent=23 // pred_fallthru
          _
        // Predicated region
        $region29: #{tpu_custom_call.1} parent=23 // pred_check
          %p232 = pneg %p76
        $region30: #{tpu_custom_call.1} parent=23 // pred_check_branch
          %234 = sbr.rel (%p232) target = $region32
        $region31: #{tpu_custom_call.1} parent=23 // pred_region
          %p235 = scmp.lt.s32.totalorder %s25, 1
          %s236 = scalar_select %p235, %s25, 1
          %s237 = smul.addr %s236, 4
          %s238 = scalar_lea.vmem %s1, %s237
        $region32: #{tpu_custom_call.1} parent=23 // pred_fallthru
          _
        // Predicated region
        $region33: #{tpu_custom_call.1} parent=23 // pred_check
          %p239 = pneg %p102
        $region34: #{tpu_custom_call.1} parent=23 // pred_check_branch
          %241 = sbr.rel (%p239) target = $region36
        $region35: #{tpu_custom_call.1} parent=23 // pred_region
          %p242 = scmp.lt.s32.totalorder %s25, 1
          %s243 = scalar_select %p242, %s25, 1
          %s244 = smul.addr %s243, 8
          %s245 = scalar_lea.vmem %s2, %s244
        $region36: #{tpu_custom_call.1} parent=23 // pred_fallthru
          _
      $region24: #{tpu_custom_call.1} parent=5 // pred_fallthru
        _
      %p246 = scmp.le.s32.totalorder 1, %s18
      %p247 = scmp.lt.s32.totalorder %s18, 3
      %p248 = pnand %p246, %p247
      %p249 = pneg %p248
      // Predicated region
      $region37: #{tpu_custom_call.1} parent=5 // pred_check
        _
      $region38: #{tpu_custom_call.1} parent=5 // pred_check_branch
        %251 = sbr.rel (%p248) target = $region40
      $region39: #{tpu_custom_call.1} parent=5 // pred_region
        %s252 = ssub.s32 %s18, 1
        %s253 = sand.u32 %s43, 1
        %s254 = scalar_lea.sflag [#allocation4], %s253
        %s255 = sand.u32 %s43, 1
        %s256 = smul.addr %s255, 32
        %s257 = scalar_lea.vmem [#allocation3], %s256
        // Predicated region
        $region41: #{tpu_custom_call.1} parent=39 // pred_check
          %p258 = pneg %p56
        $region42: #{tpu_custom_call.1} parent=39 // pred_check_branch
          %260 = sbr.rel (%p258) target = $region44
        $region43: #{tpu_custom_call.1} parent=39 // pred_region
          %261 = dma.done %s254, 512
        $region44: #{tpu_custom_call.1} parent=39 // pred_fallthru
          _
        // Predicated region
        $region45: #{tpu_custom_call.1} parent=39 // pred_check
          %p262 = pneg %p129
        $region46: #{tpu_custom_call.1} parent=39 // pred_check_branch
          %264 = sbr.rel (%p262) target = $region48
        $region47: #{tpu_custom_call.1} parent=39 // pred_region
          %265 = dma.done [#allocation7], 128
        $region48: #{tpu_custom_call.1} parent=39 // pred_fallthru
          _
        %s266 = sand.u32 %s43, 1
        %s267 = scalar_lea.sflag [#allocation4], %s266
        %s268 = sand.u32 %s43, 1
        %s269 = smul.addr %s268, 32
        %s270 = scalar_lea.vmem [#allocation3], %s269
        %p271 = pneg %p56
        %p272 = pneg %p53
        %p273 = scmp.lt.s32.totalorder %s27, 1
        %s274 = scalar_select %p273, %s27, 1
        %s275 = smul.addr %s274, 4
        %s276 = scalar_lea.vmem %s1, %s275
        %p277 = pneg %p82
        %p278 = pneg %p79
        %p279 = scmp.lt.s32.totalorder %s27, 1
        %s280 = scalar_select %p279, %s27, 1
        %s281 = smul.addr %s280, 8
        %s282 = scalar_lea.vmem %s2, %s281
        %p283 = pneg %p108
        %p284 = pneg %p105
        %p285 = pneg %p129
        %p286 = pneg %p126
        %p287 = pneg %p150
        %p288 = pneg %p147
        %p289 = pneg %p178
        %p290 = pneg %p175
        %s291 = sand.u32 %s165, 1
        %s292 = scalar_lea.sflag [#allocation5], %s291
        %s293 = sand.u32 %s165, 1
        %s294 = smul.addr %s293, 32
        %s295 = scalar_lea.vmem [#allocation8], %s294
        %p296 = scmp.lt.s32.totalorder %s27, 1
        %s297 = scalar_select %p296, %s27, 1
        %s298 = smul.addr %s297, 4
        %s299 = scalar_lea.vmem %s1, %s298
        %p300 = scmp.lt.s32.totalorder %s27, 1
        %s301 = scalar_select %p300, %s27, 1
        %s302 = smul.addr %s301, 8
        %s303 = scalar_lea.vmem %s2, %s302
        %s304 = smul.u32 2, %s28
        %p307 = scmp.eq.s32.totalorder %s28, 0
        // Predicated region
        $region49: #{tpu_custom_call.1} parent=39 // pred_check
          %p308 = pneg %p307
        $region50: #{tpu_custom_call.1} parent=39 // pred_check_branch
          %310 = sbr.rel (%p308) target = $region52
        $region51: #{tpu_custom_call.1} parent=39 // pred_region
          %v311 = vld [vmem:[%s4] sm:$0xff]
          %v312 = vld [vmem:[%s4 + $0x8] sm:$0xff]
          %v313 = vld [vmem:[%s303] sm:$0xff]
          %vm314 = vcmask 64512
          %v316 = vsel %vm314, %v311, 0
          %v319 = vsel %vm314, %v312, 0
          %321 = vmatprep.subr.mxu0 0.0
          %322 = vmatpush1.msra.mxu0 0.0
          %323 = vmatprep.subr.mxu0 0.0
          %324 = vmatpush1.msra.mxu0 0.0
          %325 = vmatprep.subr.mxu0 0.0
          %326 = vmatpush1.msra.mxu0 0.0
          %327 = vmatprep.subr.mxu0 0.0
          %328 = vmatpush1.msra.mxu0 0.0
          %329 = vmatprep.subr.mxu0 0.0
          %330 = vmatpush1.msra.mxu0 0.0
          %331 = vmatprep.subr.mxu0 0.0
          %332 = vmatpush1.msra.mxu0 0.0
          %333 = vmatprep.subr.mxu0 0.0
          %334 = vmatpush1.msra.mxu0 0.0
          %335 = vmatprep.subr.mxu0 0.0
          %336 = vmatpush1.msra.mxu0 0.0
          %337 = vmatprep.subr.mxu0 0.0
          %338 = vmatpush1.msra.mxu0 0.0
          %339 = vmatprep.subr.mxu0 0.0
          %340 = vmatpush1.msra.mxu0 0.0
          %341 = vmatprep.subr.mxu0 0.0
          %342 = vmatpush1.msra.mxu0 0.0
          %343 = vmatprep.subr.mxu0 0.0
          %344 = vmatpush1.msra.mxu0 0.0
          %345 = vmatprep.subr.mxu0 0.0
          %346 = vmatpush1.msra.mxu0 0.0
          %347 = vmatprep.subr.mxu0 0.0
          %348 = vmatpush1.msra.mxu0 0.0
          %349 = vmatprep.subr.mxu0 0.0
          %350 = vmatpush1.msra.mxu0 0.0
          %351 = vmatprep.subr.mxu0 0.0
          %352 = vmatpush1.msra.mxu0 %v313
          %353 = vmatprep.subr.mxu0 0.0
          %354 = vmatpush2.msra.mxu0 0.0
          %355 = vmatprep.subr.mxu0 0.0
          %356 = vmatpush2.msra.mxu0 0.0
          %357 = vmatprep.subr.mxu0 0.0
          %358 = vmatpush2.msra.mxu0 0.0
          %359 = vmatprep.subr.mxu0 0.0
          %360 = vmatpush2.msra.mxu0 0.0
          %361 = vmatprep.subr.mxu0 0.0
          %362 = vmatpush2.msra.mxu0 0.0
          %363 = vmatprep.subr.mxu0 0.0
          %364 = vmatpush2.msra.mxu0 0.0
          %365 = vmatprep.subr.mxu0 0.0
          %366 = vmatpush2.msra.mxu0 0.0
          %367 = vmatprep.subr.mxu0 0.0
          %368 = vmatpush2.msra.mxu0 0.0
          %369 = vmatprep.subr.mxu0 0.0
          %370 = vmatpush2.msra.mxu0 0.0
          %371 = vmatprep.subr.mxu0 0.0
          %372 = vmatpush2.msra.mxu0 0.0
          %373 = vmatprep.subr.mxu0 0.0
          %374 = vmatpush2.msra.mxu0 0.0
          %375 = vmatprep.subr.mxu0 0.0
          %376 = vmatpush2.msra.mxu0 0.0
          %377 = vmatprep.subr.mxu0 0.0
          %378 = vmatpush2.msra.mxu0 0.0
          %379 = vmatprep.subr.mxu0 0.0
          %380 = vmatpush2.msra.mxu0 0.0
          %381 = vmatprep.subr.mxu0 0.0
          %382 = vmatpush2.msra.mxu0 0.0
          %383 = vmatprep.subr.mxu0 0.0
          %384 = vmatpush2.msra.mxu0 0.0
          %385 = vmatprep.mubr.f32.mxu0 0.0
          %386 = vmatmul.mubr.f32.gmra.mxu0 %v316
          %v387 = vpop.f32.mrf.mxu0
          %v388 = vadd.f32 0.0, %v387
          %v389 = vpop.f32.mrf.mxu0
          %390 = vmatprep.mubr.f32.mxu0 0.0
          %391 = vmatmul.mubr.f32.gmra.mxu0 %v319
          %v392 = vpop.f32.mrf.mxu0
          %v393 = vadd.f32 0.0, %v392
          %v394 = vpop.f32.mrf.mxu0
          %395 = vdwg.mxu0
          %v396 = vpack.c.bf16 %v393, %v388
          %v398 = vunpack.c.l.b16 %v396
          %v399 = vunpack.c.h.b16 %v396
          %v400 = vpack.c.b16 %v398, %v398
          %v401 = vpack.c.b16 %v399, %v399
          %404 = vst [vmem:[#allocation2] sm:$0xf] %v400
          %405 = vst [vmem:[#allocation2 + $0x4] sm:$0xf] %v401
          %406 = vst [vmem:[#allocation2 + $0x8] sm:$0xf] 1065369472
        $region52: #{tpu_custom_call.1} parent=39 // pred_fallthru
          _
        %s407 = smul.u32 %s28, 256
        %s408 = sshra.s32 %s407, 7
        %s409 = sand.u32 %s407, 127
        %s410 = smul.addr %s408, 8
        %s411 = scalar_lea.vmem %s257, %s410 [#allocation3]
        %v412 = vld [vmem:[%s411] sm:$0xff]
        %v413 = vld [vmem:[%s411 + $0x8] sm:$0xff]
        %v414 = vld [vmem:[%s411 + $0x10] sm:$0xff]
        %v415 = vld [vmem:[%s411 + $0x18] sm:$0xff]
        %v416 = vld [vmem:[#allocation6] sm:$0xff]
        %vm417 = vcmask 130048
        %v419 = vsel %vm417, %v416, 0
        %421 = vmatprep.subr.mxu0 0.0
        %422 = vmatpush1.msra.mxu0 0.0
        %423 = vmatprep.subr.mxu0 0.0
        %424 = vmatpush1.msra.mxu0 0.0
        %425 = vmatprep.subr.mxu0 0.0
        %426 = vmatpush1.msra.mxu0 0.0
        %427 = vmatprep.subr.mxu0 0.0
        %428 = vmatpush1.msra.mxu0 0.0
        %429 = vmatprep.subr.mxu0 0.0
        %430 = vmatpush1.msra.mxu0 0.0
        %431 = vmatprep.subr.mxu0 0.0
        %432 = vmatpush1.msra.mxu0 0.0
        %433 = vmatprep.subr.mxu0 0.0
        %434 = vmatpush1.msra.mxu0 0.0
        %435 = vmatprep.subr.mxu0 0.0
        %436 = vmatpush1.msra.mxu0 0.0
        %437 = vmatprep.subr.mxu0 0.0
        %438 = vmatpush1.msra.mxu0 0.0
        %439 = vmatprep.subr.mxu0 0.0
        %440 = vmatpush1.msra.mxu0 0.0
        %441 = vmatprep.subr.mxu0 0.0
        %442 = vmatpush1.msra.mxu0 0.0
        %443 = vmatprep.subr.mxu0 0.0
        %444 = vmatpush1.msra.mxu0 0.0
        %445 = vmatprep.subr.mxu0 0.0
        %446 = vmatpush1.msra.mxu0 0.0
        %447 = vmatprep.subr.mxu0 0.0
        %448 = vmatpush1.msra.mxu0 0.0
        %449 = vmatprep.subr.mxu0 %v415
        %450 = vmatpush1.msra.mxu0 %v414
        %451 = vmatprep.subr.mxu0 %v413
        %452 = vmatpush1.msra.mxu0 %v412
        %453 = vmatprep.subr.mxu0 0.0
        %454 = vmatpush2.msra.mxu0 0.0
        %455 = vmatprep.subr.mxu0 0.0
        %456 = vmatpush2.msra.mxu0 0.0
        %457 = vmatprep.subr.mxu0 0.0
        %458 = vmatpush2.msra.mxu0 0.0
        %459 = vmatprep.subr.mxu0 0.0
        %460 = vmatpush2.msra.mxu0 0.0
        %461 = vmatprep.subr.mxu0 0.0
        %462 = vmatpush2.msra.mxu0 0.0
        %463 = vmatprep.subr.mxu0 0.0
        %464 = vmatpush2.msra.mxu0 0.0
        %465 = vmatprep.subr.mxu0 0.0
        %466 = vmatpush2.msra.mxu0 0.0
        %467 = vmatprep.subr.mxu0 0.0
        %468 = vmatpush2.msra.mxu0 0.0
        %469 = vmatprep.subr.mxu0 0.0
        %470 = vmatpush2.msra.mxu0 0.0
        %471 = vmatprep.subr.mxu0 0.0
        %472 = vmatpush2.msra.mxu0 0.0
        %473 = vmatprep.subr.mxu0 0.0
        %474 = vmatpush2.msra.mxu0 0.0
        %475 = vmatprep.subr.mxu0 0.0
        %476 = vmatpush2.msra.mxu0 0.0
        %477 = vmatprep.subr.mxu0 0.0
        %478 = vmatpush2.msra.mxu0 0.0
        %479 = vmatprep.subr.mxu0 0.0
        %480 = vmatpush2.msra.mxu0 0.0
        %481 = vmatprep.subr.mxu0 0.0
        %482 = vmatpush2.msra.mxu0 0.0
        %483 = vmatprep.subr.mxu0 0.0
        %484 = vmatpush2.msra.mxu0 0.0
        %485 = vmatprep.mubr.f32.mxu0 0.0
        %486 = vmatmul.mubr.f32.gmra.mxu0 %v419
        %v487 = vpop.f32.mrf.mxu0
        %v488 = vadd.f32 0.0, %v487
        %v489 = vpop.f32.mrf.mxu0
        %v490 = vadd.f32 0.0, %v489
        %491 = vdwg.mxu0
        %v492 = vpack.c.bf16 %v488, %v488
        %v493 = vpack.c.bf16 %v490, %v490
        %v494 = vld [vmem:[%s299] sm:$0xf]
        %495 = vxpose.xlu0.c.b16.start [1/8] %v492, 128
        %496 = vxpose.xlu0.c.b16.cont [2/8] 0, 128
        %497 = vxpose.xlu0.c.b16.cont [3/8] 0, 128
        %498 = vxpose.xlu0.c.b16.cont [4/8] 0, 128
        %499 = vxpose.xlu0.c.b16.cont [5/8] 0, 128
        %500 = vxpose.xlu0.c.b16.cont [6/8] 0, 128
        %501 = vxpose.xlu0.c.b16.cont [7/8] 0, 128
        %502 = vxpose.xlu0.c.b16.end [8/8] 0, 128
        %v503 = vpop.trf.xlu0
        %v504 = vpop.trf.xlu0
        %v505 = vpop.trf.xlu0
        %v506 = vpop.trf.xlu0
        %v507 = vpop.trf.xlu0
        %v508 = vpop.trf.xlu0
        %v509 = vpop.trf.xlu0
        %v510 = vpop.trf.xlu0
        %511 = vxpose.xlu0.c.b16.start [1/8] %v493, 128
        %512 = vxpose.xlu0.c.b16.cont [2/8] 0, 128
        %513 = vxpose.xlu0.c.b16.cont [3/8] 0, 128
        %514 = vxpose.xlu0.c.b16.cont [4/8] 0, 128
        %515 = vxpose.xlu0.c.b16.cont [5/8] 0, 128
        %516 = vxpose.xlu0.c.b16.cont [6/8] 0, 128
        %517 = vxpose.xlu0.c.b16.cont [7/8] 0, 128
        %518 = vxpose.xlu0.c.b16.end [8/8] 0, 128
        %v519 = vpop.trf.xlu0
        %v520 = vpop.trf.xlu0
        %v521 = vpop.trf.xlu0
        %v522 = vpop.trf.xlu0
        %v523 = vpop.trf.xlu0
        %v524 = vpop.trf.xlu0
        %v525 = vpop.trf.xlu0
        %v526 = vpop.trf.xlu0
        %vm527 = vcmask 64512
        %v529 = vsel %vm527, %v503, 0
        %v532 = vsel %vm527, %v504, 0
        %v535 = vsel %vm527, %v505, 0
        %v538 = vsel %vm527, %v506, 0
        %v541 = vsel %vm527, %v507, 0
        %v544 = vsel %vm527, %v508, 0
        %v547 = vsel %vm527, %v509, 0
        %v550 = vsel %vm527, %v510, 0
        %v553 = vsel %vm527, %v519, 0
        %v556 = vsel %vm527, %v520, 0
        %v559 = vsel %vm527, %v521, 0
        %v562 = vsel %vm527, %v522, 0
        %v565 = vsel %vm527, %v523, 0
        %v568 = vsel %vm527, %v524, 0
        %v571 = vsel %vm527, %v525, 0
        %v574 = vsel %vm527, %v526, 0
        %vm576 = vcmask 1043456
        %v578 = vsel %vm576, %v494, 0
        %580 = vmatprep.subr.bf16.mxu0 0
        %581 = vmatpush1.bf16.msra.mxu0 0
        %582 = vmatprep.subr.bf16.mxu0 0
        %583 = vmatpush1.bf16.msra.mxu0 0
        %584 = vmatprep.subr.bf16.mxu0 0
        %585 = vmatpush1.bf16.msra.mxu0 0
        %586 = vmatprep.subr.bf16.mxu0 0
        %587 = vmatpush1.bf16.msra.mxu0 0
        %588 = vmatprep.subr.bf16.mxu0 0
        %589 = vmatpush1.bf16.msra.mxu0 0
        %590 = vmatprep.subr.bf16.mxu0 0
        %591 = vmatpush1.bf16.msra.mxu0 0
        %592 = vmatprep.subr.bf16.mxu0 0
        %593 = vmatpush1.bf16.msra.mxu0 0
        %594 = vmatprep.subr.bf16.mxu0 0
        %595 = vmatpush1.bf16.msra.mxu0 %v578
        %596 = vmatprep.subr.bf16.mxu0 0
        %597 = vmatpush2.bf16.msra.mxu0 0
        %598 = vmatprep.subr.bf16.mxu0 0
        %599 = vmatpush2.bf16.msra.mxu0 0
        %600 = vmatprep.subr.bf16.mxu0 0
        %601 = vmatpush2.bf16.msra.mxu0 0
        %602 = vmatprep.subr.bf16.mxu0 0
        %603 = vmatpush2.bf16.msra.mxu0 0
        %604 = vmatprep.subr.bf16.mxu0 0
        %605 = vmatpush2.bf16.msra.mxu0 0
        %606 = vmatprep.subr.bf16.mxu0 0
        %607 = vmatpush2.bf16.msra.mxu0 0
        %608 = vmatprep.subr.bf16.mxu0 0
        %609 = vmatpush2.bf16.msra.mxu0 0
        %610 = vmatprep.subr.bf16.mxu0 0
        %611 = vmatpush2.bf16.msra.mxu0 0
        %612 = vmatprep.mubr.bf16.mxu0 0
        %613 = vmatmul.mubr.bf16.gmra.mxu0 %v529
        %v614 = vpop.f32.mrf.mxu0
        %v615 = vadd.f32 0.0, %v614
        %v616 = vpop.f32.mrf.mxu0
        %v617 = vpop.f32.mrf.mxu0
        %v618 = vadd.f32 0.0, %v617
        %v619 = vpop.f32.mrf.mxu0
        %620 = vmatprep.mubr.bf16.mxu0 0
        %621 = vmatmul.mubr.bf16.gmra.mxu0 %v532
        %v622 = vpop.f32.mrf.mxu0
        %v623 = vadd.f32 0.0, %v622
        %v624 = vpop.f32.mrf.mxu0
        %v625 = vpop.f32.mrf.mxu0
        %v626 = vadd.f32 0.0, %v625
        %v627 = vpop.f32.mrf.mxu0
        %628 = vmatprep.mubr.bf16.mxu0 0
        %629 = vmatmul.mubr.bf16.gmra.mxu0 %v535
        %v630 = vpop.f32.mrf.mxu0
        %v631 = vadd.f32 0.0, %v630
        %v632 = vpop.f32.mrf.mxu0
        %v633 = vpop.f32.mrf.mxu0
        %v634 = vadd.f32 0.0, %v633
        %v635 = vpop.f32.mrf.mxu0
        %636 = vmatprep.mubr.bf16.mxu0 0
        %637 = vmatmul.mubr.bf16.gmra.mxu0 %v538
        %v638 = vpop.f32.mrf.mxu0
        %v639 = vadd.f32 0.0, %v638
        %v640 = vpop.f32.mrf.mxu0
        %v641 = vpop.f32.mrf.mxu0
        %v642 = vadd.f32 0.0, %v641
        %v643 = vpop.f32.mrf.mxu0
        %644 = vmatprep.mubr.bf16.mxu0 0
        %645 = vmatmul.mubr.bf16.gmra.mxu0 %v541
        %v646 = vpop.f32.mrf.mxu0
        %v647 = vadd.f32 0.0, %v646
        %v648 = vpop.f32.mrf.mxu0
        %v649 = vpop.f32.mrf.mxu0
        %v650 = vadd.f32 0.0, %v649
        %v651 = vpop.f32.mrf.mxu0
        %652 = vmatprep.mubr.bf16.mxu0 0
        %653 = vmatmul.mubr.bf16.gmra.mxu0 %v544
        %v654 = vpop.f32.mrf.mxu0
        %v655 = vadd.f32 0.0, %v654
        %v656 = vpop.f32.mrf.mxu0
        %v657 = vpop.f32.mrf.mxu0
        %v658 = vadd.f32 0.0, %v657
        %v659 = vpop.f32.mrf.mxu0
        %660 = vmatprep.mubr.bf16.mxu0 0
        %661 = vmatmul.mubr.bf16.gmra.mxu0 %v547
        %v662 = vpop.f32.mrf.mxu0
        %v663 = vadd.f32 0.0, %v662
        %v664 = vpop.f32.mrf.mxu0
        %v665 = vpop.f32.mrf.mxu0
        %v666 = vadd.f32 0.0, %v665
        %v667 = vpop.f32.mrf.mxu0
        %668 = vmatprep.mubr.bf16.mxu0 0
        %669 = vmatmul.mubr.bf16.gmra.mxu0 %v550
        %v670 = vpop.f32.mrf.mxu0
        %v671 = vadd.f32 0.0, %v670
        %v672 = vpop.f32.mrf.mxu0
        %v673 = vpop.f32.mrf.mxu0
        %v674 = vadd.f32 0.0, %v673
        %v675 = vpop.f32.mrf.mxu0
        %676 = vmatprep.mubr.bf16.mxu0 0
        %677 = vmatmul.mubr.bf16.gmra.mxu0 %v553
        %v678 = vpop.f32.mrf.mxu0
        %v679 = vadd.f32 0.0, %v678
        %v680 = vpop.f32.mrf.mxu0
        %v681 = vpop.f32.mrf.mxu0
        %v682 = vadd.f32 0.0, %v681
        %v683 = vpop.f32.mrf.mxu0
        %684 = vmatprep.mubr.bf16.mxu0 0
        %685 = vmatmul.mubr.bf16.gmra.mxu0 %v556
        %v686 = vpop.f32.mrf.mxu0
        %v687 = vadd.f32 0.0, %v686
        %v688 = vpop.f32.mrf.mxu0
        %v689 = vpop.f32.mrf.mxu0
        %v690 = vadd.f32 0.0, %v689
        %v691 = vpop.f32.mrf.mxu0
        %692 = vmatprep.mubr.bf16.mxu0 0
        %693 = vmatmul.mubr.bf16.gmra.mxu0 %v559
        %v694 = vpop.f32.mrf.mxu0
        %v695 = vadd.f32 0.0, %v694
        %v696 = vpop.f32.mrf.mxu0
        %v697 = vpop.f32.mrf.mxu0
        %v698 = vadd.f32 0.0, %v697
        %v699 = vpop.f32.mrf.mxu0
        %700 = vmatprep.mubr.bf16.mxu0 0
        %701 = vmatmul.mubr.bf16.gmra.mxu0 %v562
        %v702 = vpop.f32.mrf.mxu0
        %v703 = vadd.f32 0.0, %v702
        %v704 = vpop.f32.mrf.mxu0
        %v705 = vpop.f32.mrf.mxu0
        %v706 = vadd.f32 0.0, %v705
        %v707 = vpop.f32.mrf.mxu0
        %708 = vmatprep.mubr.bf16.mxu0 0
        %709 = vmatmul.mubr.bf16.gmra.mxu0 %v565
        %v710 = vpop.f32.mrf.mxu0
        %v711 = vadd.f32 0.0, %v710
        %v712 = vpop.f32.mrf.mxu0
        %v713 = vpop.f32.mrf.mxu0
        %v714 = vadd.f32 0.0, %v713
        %v715 = vpop.f32.mrf.mxu0
        %716 = vmatprep.mubr.bf16.mxu0 0
        %717 = vmatmul.mubr.bf16.gmra.mxu0 %v568
        %v718 = vpop.f32.mrf.mxu0
        %v719 = vadd.f32 0.0, %v718
        %v720 = vpop.f32.mrf.mxu0
        %v721 = vpop.f32.mrf.mxu0
        %v722 = vadd.f32 0.0, %v721
        %v723 = vpop.f32.mrf.mxu0
        %724 = vmatprep.mubr.bf16.mxu0 0
        %725 = vmatmul.mubr.bf16.gmra.mxu0 %v571
        %v726 = vpop.f32.mrf.mxu0
        %v727 = vadd.f32 0.0, %v726
        %v728 = vpop.f32.mrf.mxu0
        %v729 = vpop.f32.mrf.mxu0
        %v730 = vadd.f32 0.0, %v729
        %v731 = vpop.f32.mrf.mxu0
        %732 = vmatprep.mubr.bf16.mxu0 0
        %733 = vmatmul.mubr.bf16.gmra.mxu0 %v574
        %v734 = vpop.f32.mrf.mxu0
        %v735 = vadd.f32 0.0, %v734
        %v736 = vpop.f32.mrf.mxu0
        %v737 = vpop.f32.mrf.mxu0
        %v738 = vadd.f32 0.0, %v737
        %v739 = vpop.f32.mrf.mxu0
        %740 = vdwg.mxu0
        %v741 = vlaneseq
        %v742 = vand.u32 %v741, 127
        %vm743 = vcmp.lt.s32.totalorder %v742, 64
        %v744 = vsel %vm743, %v615, -1e+30
        %v745 = vsel %vm743, %v618, -1e+30
        %v746 = vsel %vm743, %v623, -1e+30
        %v747 = vsel %vm743, %v626, -1e+30
        %v748 = vsel %vm743, %v631, -1e+30
        %v749 = vsel %vm743, %v634, -1e+30
        %v750 = vsel %vm743, %v639, -1e+30
        %v751 = vsel %vm743, %v642, -1e+30
        %v752 = vsel %vm743, %v647, -1e+30
        %v753 = vsel %vm743, %v650, -1e+30
        %v754 = vsel %vm743, %v655, -1e+30
        %v755 = vsel %vm743, %v658, -1e+30
        %v756 = vsel %vm743, %v663, -1e+30
        %v757 = vsel %vm743, %v666, -1e+30
        %v758 = vsel %vm743, %v671, -1e+30
        %v759 = vsel %vm743, %v674, -1e+30
        %v760 = vsel %vm743, %v679, -1e+30
        %v761 = vsel %vm743, %v682, -1e+30
        %v762 = vsel %vm743, %v687, -1e+30
        %v763 = vsel %vm743, %v690, -1e+30
        %v764 = vsel %vm743, %v695, -1e+30
        %v765 = vsel %vm743, %v698, -1e+30
        %v766 = vsel %vm743, %v703, -1e+30
        %v767 = vsel %vm743, %v706, -1e+30
        %v768 = vsel %vm743, %v711, -1e+30
        %v769 = vsel %vm743, %v714, -1e+30
        %v770 = vsel %vm743, %v719, -1e+30
        %v771 = vsel %vm743, %v722, -1e+30
        %v772 = vsel %vm743, %v727, -1e+30
        %v773 = vsel %vm743, %v730, -1e+30
        %v774 = vsel %vm743, %v735, -1e+30
        %v775 = vsel %vm743, %v738, -1e+30
        %776 = vmax.xlane.f32.xlu0 %v744
        %v777 = vpop.xlane.xlu0 %776
        %778 = vmax.xlane.f32.xlu0 %v745
        %v779 = vpop.xlane.xlu0 %778
        %780 = vmax.xlane.f32.xlu0 %v746
        %v781 = vpop.xlane.xlu0 %780
        %782 = vmax.xlane.f32.xlu0 %v747
        %v783 = vpop.xlane.xlu0 %782
        %784 = vmax.xlane.f32.xlu0 %v748
        %v785 = vpop.xlane.xlu0 %784
        %786 = vmax.xlane.f32.xlu0 %v749
        %v787 = vpop.xlane.xlu0 %786
        %788 = vmax.xlane.f32.xlu0 %v750
        %v789 = vpop.xlane.xlu0 %788
        %790 = vmax.xlane.f32.xlu0 %v751
        %v791 = vpop.xlane.xlu0 %790
        %792 = vmax.xlane.f32.xlu0 %v752
        %v793 = vpop.xlane.xlu0 %792
        %794 = vmax.xlane.f32.xlu0 %v753
        %v795 = vpop.xlane.xlu0 %794
        %796 = vmax.xlane.f32.xlu0 %v754
        %v797 = vpop.xlane.xlu0 %796
        %798 = vmax.xlane.f32.xlu0 %v755
        %v799 = vpop.xlane.xlu0 %798
        %800 = vmax.xlane.f32.xlu0 %v756
        %v801 = vpop.xlane.xlu0 %800
        %802 = vmax.xlane.f32.xlu0 %v757
        %v803 = vpop.xlane.xlu0 %802
        %804 = vmax.xlane.f32.xlu0 %v758
        %v805 = vpop.xlane.xlu0 %804
        %806 = vmax.xlane.f32.xlu0 %v759
        %v807 = vpop.xlane.xlu0 %806
        %808 = vmax.xlane.f32.xlu0 %v760
        %v809 = vpop.xlane.xlu0 %808
        %810 = vmax.xlane.f32.xlu0 %v761
        %v811 = vpop.xlane.xlu0 %810
        %812 = vmax.xlane.f32.xlu0 %v762
        %v813 = vpop.xlane.xlu0 %812
        %814 = vmax.xlane.f32.xlu0 %v763
        %v815 = vpop.xlane.xlu0 %814
        %816 = vmax.xlane.f32.xlu0 %v764
        %v817 = vpop.xlane.xlu0 %816
        %818 = vmax.xlane.f32.xlu0 %v765
        %v819 = vpop.xlane.xlu0 %818
        %820 = vmax.xlane.f32.xlu0 %v766
        %v821 = vpop.xlane.xlu0 %820
        %822 = vmax.xlane.f32.xlu0 %v767
        %v823 = vpop.xlane.xlu0 %822
        %824 = vmax.xlane.f32.xlu0 %v768
        %v825 = vpop.xlane.xlu0 %824
        %826 = vmax.xlane.f32.xlu0 %v769
        %v827 = vpop.xlane.xlu0 %826
        %828 = vmax.xlane.f32.xlu0 %v770
        %v829 = vpop.xlane.xlu0 %828
        %830 = vmax.xlane.f32.xlu0 %v771
        %v831 = vpop.xlane.xlu0 %830
        %832 = vmax.xlane.f32.xlu0 %v772
        %v833 = vpop.xlane.xlu0 %832
        %834 = vmax.xlane.f32.xlu0 %v773
        %v835 = vpop.xlane.xlu0 %834
        %836 = vmax.xlane.f32.xlu0 %v774
        %v837 = vpop.xlane.xlu0 %836
        %838 = vmax.xlane.f32.xlu0 %v775
        %v839 = vpop.xlane.xlu0 %838
        %v840 = vsub.f32 %v744, %v777
        %v841 = vsub.f32 %v745, %v779
        %v842 = vsub.f32 %v746, %v781
        %v843 = vsub.f32 %v747, %v783
        %v844 = vsub.f32 %v748, %v785
        %v845 = vsub.f32 %v749, %v787
        %v846 = vsub.f32 %v750, %v789
        %v847 = vsub.f32 %v751, %v791
        %v848 = vsub.f32 %v752, %v793
        %v849 = vsub.f32 %v753, %v795
        %v850 = vsub.f32 %v754, %v797
        %v851 = vsub.f32 %v755, %v799
        %v852 = vsub.f32 %v756, %v801
        %v853 = vsub.f32 %v757, %v803
        %v854 = vsub.f32 %v758, %v805
        %v855 = vsub.f32 %v759, %v807
        %v856 = vsub.f32 %v760, %v809
        %v857 = vsub.f32 %v761, %v811
        %v858 = vsub.f32 %v762, %v813
        %v859 = vsub.f32 %v763, %v815
        %v860 = vsub.f32 %v764, %v817
        %v861 = vsub.f32 %v765, %v819
        %v862 = vsub.f32 %v766, %v821
        %v863 = vsub.f32 %v767, %v823
        %v864 = vsub.f32 %v768, %v825
        %v865 = vsub.f32 %v769, %v827
        %v866 = vsub.f32 %v770, %v829
        %v867 = vsub.f32 %v771, %v831
        %v868 = vsub.f32 %v772, %v833
        %v869 = vsub.f32 %v773, %v835
        %v870 = vsub.f32 %v774, %v837
        %v871 = vsub.f32 %v775, %v839
        %v872 = vmul.f32 %v840, 1.442695
        %v873 = vpow.pop %v872
        %v874 = vmul.f32 %v841, 1.442695
        %v875 = vpow.pop %v874
        %v876 = vmul.f32 %v842, 1.442695
        %v877 = vpow.pop %v876
        %v878 = vmul.f32 %v843, 1.442695
        %v879 = vpow.pop %v878
        %v880 = vmul.f32 %v844, 1.442695
        %v881 = vpow.pop %v880
        %v882 = vmul.f32 %v845, 1.442695
        %v883 = vpow.pop %v882
        %v884 = vmul.f32 %v846, 1.442695
        %v885 = vpow.pop %v884
        %v886 = vmul.f32 %v847, 1.442695
        %v887 = vpow.pop %v886
        %v888 = vmul.f32 %v848, 1.442695
        %v889 = vpow.pop %v888
        %v890 = vmul.f32 %v849, 1.442695
        %v891 = vpow.pop %v890
        %v892 = vmul.f32 %v850, 1.442695
        %v893 = vpow.pop %v892
        %v894 = vmul.f32 %v851, 1.442695
        %v895 = vpow.pop %v894
        %v896 = vmul.f32 %v852, 1.442695
        %v897 = vpow.pop %v896
        %v898 = vmul.f32 %v853, 1.442695
        %v899 = vpow.pop %v898
        %v900 = vmul.f32 %v854, 1.442695
        %v901 = vpow.pop %v900
        %v902 = vmul.f32 %v855, 1.442695
        %v903 = vpow.pop %v902
        %v904 = vmul.f32 %v856, 1.442695
        %v905 = vpow.pop %v904
        %v906 = vmul.f32 %v857, 1.442695
        %v907 = vpow.pop %v906
        %v908 = vmul.f32 %v858, 1.442695
        %v909 = vpow.pop %v908
        %v910 = vmul.f32 %v859, 1.442695
        %v911 = vpow.pop %v910
        %v912 = vmul.f32 %v860, 1.442695
        %v913 = vpow.pop %v912
        %v914 = vmul.f32 %v861, 1.442695
        %v915 = vpow.pop %v914
        %v916 = vmul.f32 %v862, 1.442695
        %v917 = vpow.pop %v916
        %v918 = vmul.f32 %v863, 1.442695
        %v919 = vpow.pop %v918
        %v920 = vmul.f32 %v864, 1.442695
        %v921 = vpow.pop %v920
        %v922 = vmul.f32 %v865, 1.442695
        %v923 = vpow.pop %v922
        %v924 = vmul.f32 %v866, 1.442695
        %v925 = vpow.pop %v924
        %v926 = vmul.f32 %v867, 1.442695
        %v927 = vpow.pop %v926
        %v928 = vmul.f32 %v868, 1.442695
        %v929 = vpow.pop %v928
        %v930 = vmul.f32 %v869, 1.442695
        %v931 = vpow.pop %v930
        %v932 = vmul.f32 %v870, 1.442695
        %v933 = vpow.pop %v932
        %v934 = vmul.f32 %v871, 1.442695
        %v935 = vpow.pop %v934
        %v936 = vld [vmem:[#allocation2] sm:$0xf]
        %v937 = vld [vmem:[#allocation2 + $0x4] sm:$0xf]
        %v938 = vld [vmem:[#allocation2 + $0x8] sm:$0xf]
        %v939 = vpack.c.bf16 %v875, %v873
        %v940 = vpack.c.bf16 %v879, %v877
        %v941 = vpack.c.bf16 %v883, %v881
        %v942 = vpack.c.bf16 %v887, %v885
        %v943 = vpack.c.bf16 %v891, %v889
        %v944 = vpack.c.bf16 %v895, %v893
        %v945 = vpack.c.bf16 %v899, %v897
        %v946 = vpack.c.bf16 %v903, %v901
        %v947 = vpack.c.bf16 %v907, %v905
        %v948 = vpack.c.bf16 %v911, %v909
        %v949 = vpack.c.bf16 %v915, %v913
        %v950 = vpack.c.bf16 %v919, %v917
        %v951 = vpack.c.bf16 %v923, %v921
        %v952 = vpack.c.bf16 %v927, %v925
        %v953 = vpack.c.bf16 %v931, %v929
        %v954 = vpack.c.bf16 %v935, %v933
        %v958 = vunpack.c.l.b16 %v936
        %v959 = vunpack.c.l.b16 %v937
        %v960 = vunpack.c.l.b16 %v938
        %v961 = vpack.c.b16 %v959, %v958
        %v962 = vpack.c.b16 %v960, %v960
        %965 = vmatprep.subr.bf16.mxu0 0
        %966 = vmatpush1.bf16.xpose.msra.mxu0 %v946
        %967 = vmatprep.subr.bf16.mxu0 0
        %968 = vmatpush1.bf16.xpose.msra.mxu0 %v945
        %969 = vmatprep.subr.bf16.mxu0 0
        %970 = vmatpush1.bf16.xpose.msra.mxu0 %v944
        %971 = vmatprep.subr.bf16.mxu0 0
        %972 = vmatpush1.bf16.xpose.msra.mxu0 %v943
        %973 = vmatprep.subr.bf16.mxu0 0
        %974 = vmatpush1.bf16.xpose.msra.mxu0 %v942
        %975 = vmatprep.subr.bf16.mxu0 0
        %976 = vmatpush1.bf16.xpose.msra.mxu0 %v941
        %977 = vmatprep.subr.bf16.mxu0 0
        %978 = vmatpush1.bf16.xpose.msra.mxu0 %v940
        %979 = vmatprep.subr.bf16.mxu0 0
        %980 = vmatpush1.bf16.xpose.msra.mxu0 %v939
        %981 = vmatprep.subr.bf16.mxu0 0
        %982 = vmatpush2.bf16.xpose.msra.mxu0 %v954
        %983 = vmatprep.subr.bf16.mxu0 0
        %984 = vmatpush2.bf16.xpose.msra.mxu0 %v953
        %985 = vmatprep.subr.bf16.mxu0 0
        %986 = vmatpush2.bf16.xpose.msra.mxu0 %v952
        %987 = vmatprep.subr.bf16.mxu0 0
        %988 = vmatpush2.bf16.xpose.msra.mxu0 %v951
        %989 = vmatprep.subr.bf16.mxu0 0
        %990 = vmatpush2.bf16.xpose.msra.mxu0 %v950
        %991 = vmatprep.subr.bf16.mxu0 0
        %992 = vmatpush2.bf16.xpose.msra.mxu0 %v949
        %993 = vmatprep.subr.bf16.mxu0 0
        %994 = vmatpush2.bf16.xpose.msra.mxu0 %v948
        %995 = vmatprep.subr.bf16.mxu0 0
        %996 = vmatpush2.bf16.xpose.msra.mxu0 %v947
        %997 = vmatprep.mubr.bf16.mxu0 0
        %998 = vmatmul.mubr.bf16.gmra.mxu0 %v961
        %v999 = vpop.f32.mrf.mxu0
        %v1000 = vadd.f32 0.0, %v999
        %v1001 = vpop.f32.mrf.mxu0
        %v1002 = vadd.f32 0.0, %v1001
        %v1003 = vpop.f32.mrf.mxu0
        %v1004 = vadd.f32 0.0, %v1003
        %v1005 = vpop.f32.mrf.mxu0
        %v1006 = vadd.f32 0.0, %v1005
        %1007 = vmatprep.mubr.bf16.mxu0 0
        %1008 = vmatmul.mubr.bf16.gmra.mxu0 %v962
        %v1009 = vpop.f32.mrf.mxu0
        %v1010 = vadd.f32 0.0, %v1009
        %v1011 = vpop.f32.mrf.mxu0
        %v1012 = vadd.f32 0.0, %v1011
        %v1013 = vpop.f32.mrf.mxu0
        %v1014 = vpop.f32.mrf.mxu0
        %1015 = vdwg.mxu0
        %v1016 = vrcp.pop %v1010
        %v1017 = vrcp.pop %v1012
        %v1018 = vlaneseq
        %v1019 = vshrl.u32 %v1018, 7
        %v1020 = vsub.s32 0, %v1019
        %v1021 = vrot.slane %v1016, %v1020
        %v1022 = vlaneseq
        %v1023 = vshrl.u32 %v1022, 7
        %v1024 = vsub.s32 0, %v1023
        %v1025 = vrot.slane %v1017, %v1024
        %v1026 = vmul.f32 %v1000, %v1021
        %v1027 = vmul.f32 %v1002, %v1025
        %v1028 = vmul.f32 %v1004, %v1021
        %v1029 = vmul.f32 %v1006, %v1025
        %v1030 = vadd.f32 %v1026, %v412
        %v1031 = vadd.f32 %v1027, %v413
        %v1032 = vadd.f32 %v1028, %v414
        %v1033 = vadd.f32 %v1029, %v415
        %1034 = vst [vmem:[%s295] sm:$0xff] %v1030
        %1035 = vst [vmem:[%s295 + $0x8] sm:$0xff] %v1031
        %1036 = vst [vmem:[%s295 + $0x10] sm:$0xff] %v1032
        %1037 = vst [vmem:[%s295 + $0x18] sm:$0xff] %v1033
        %s1038 = sand.u32 %s165, 1
        %s1039 = scalar_lea.sflag [#allocation5], %s1038
        %s1040 = sand.u32 %s165, 1
        %s1041 = smul.addr %s1040, 32
        %s1042 = scalar_lea.vmem [#allocation8], %s1041
        // Predicated region
        $region53: #{tpu_custom_call.1} parent=39 // pred_check
          %p1043 = pneg %p175
        $region54: #{tpu_custom_call.1} parent=39 // pred_check_branch
          %1045 = sbr.rel (%p1043) target = $region56
        $region55: #{tpu_custom_call.1} parent=39 // pred_region
          %s1046 = smul.u32 2, %s28
          %s1048 = ssub.s32 512, 512
          %1049 = vsyncadd %s1039, %s1048
          %s1050 = smul.addr %s27, 4
          %s1051 = sadd.s32 %s1046, %s1050
          %s1052 = smul.addr %s1051, 128
          %s1053 = scalar_lea.hbm %s5, %s1052
          %s1054 = sshll.u32 %s1042, 4
          %s1055 = int_to_ptr.vmem [resolvable:$true] %s1054
          %1060 = dma.vmem_to_hbm [thread:$0]  %s1055, 512, %s1053, %s1039, 256, 256, 16
        $region56: #{tpu_custom_call.1} parent=39 // pred_fallthru
          _
      $region40: #{tpu_custom_call.1} parent=5 // pred_fallthru
        _
      %p1061 = scmp.le.s32.totalorder 2, %s18
      // Predicated region
      $region57: #{tpu_custom_call.1} parent=5 // pred_check
        %p1062 = pneg %p1061
      $region58: #{tpu_custom_call.1} parent=5 // pred_check_branch
        %1064 = sbr.rel (%p1062) target = $region60
      $region59: #{tpu_custom_call.1} parent=5 // pred_region
        %s1065 = ssub.s32 %s18, 2
        // Predicated region
        $region61: #{tpu_custom_call.1} parent=59 // pred_check
          %p1066 = pneg %p181
        $region62: #{tpu_custom_call.1} parent=59 // pred_check_branch
          %1068 = sbr.rel (%p1066) target = $region64
        $region63: #{tpu_custom_call.1} parent=59 // pred_region
          %s1069 = sand.u32 %s166, 1
          %s1070 = scalar_lea.sflag [#allocation5], %s1069
          %s1071 = sand.u32 %s166, 1
          %s1072 = smul.addr %s1071, 32
          %s1073 = scalar_lea.vmem [#allocation8], %s1072
          %1074 = dma.done %s1070, 512
        $region64: #{tpu_custom_call.1} parent=59 // pred_fallthru
          _
      $region60: #{tpu_custom_call.1} parent=5 // pred_fallthru
        _
    $region6: #{tpu_custom_call.1} parent=1 // loop_footer
      %s22 = sadd.s32 1, %s18
    $region7: #{tpu_custom_call.1} parent=1 // loop_footer_branch
      %17 = sbr.rel target = $region3
    $region8: #{tpu_custom_call.1} parent=1 // loop_exit
      _
    %1075 = vsyncpa [#allocation4], 1
    %s1076 = scalar_lea.sflag [#allocation4], 1
    %1077 = vsyncpa %s1076, 1
    %1078 = vsyncpa [#allocation7], 1
    %1079 = vsyncpa [#allocation5], 1
    %s1080 = scalar_lea.sflag [#allocation5], 1
    %1081 = vsyncpa %s1080, 1

</llo_original>
